<compile_context>
chip_gen: v5e
topology: v5e:2x2
jax: 0.10.0
libtpu: 0.0.40
codegen_flags: <defaults>
</compile_context>

<pallas_src>
import jax
import jax.numpy as jnp
import numpy as np
from jax.experimental import pallas as pl
from jax.experimental.pallas import tpu as pltpu


MAX_BATCH_TILE = 16  # bounds static unroll of the per-image rescale loop


def cam_kernel(x_ref, w1_ref, b1_ref, w2_ref, b2_ref, out_ref):
    bt, c, hw = x_ref.shape
    inv_hw = jnp.float32(1.0 / hw)

    x = x_ref[...]                                                  # (Bt, C, HW)

    # Global average / max pooling over the spatial (lane) axis; f32 accum.
    avg = jnp.sum(x, axis=-1, dtype=jnp.float32) * inv_hw           # (Bt, C)
    mx = jnp.max(x, axis=-1).astype(jnp.float32)                    # (Bt, C)

    # Shared MLP applied to all pooled vectors (both pool types, all images
    # in the block) with one batched matmul pair on the MXU.
    pooled = jnp.concatenate([avg, mx], axis=0)                     # (2Bt, C)
    h = jnp.dot(pooled, w1_ref[...],
                preferred_element_type=jnp.float32) + b1_ref[...]   # (2Bt, Hid)
    h = jnp.where(h > 0, h, 0.2 * h)                                # LeakyReLU(0.2)
    att = jnp.dot(h, w2_ref[...],
                  preferred_element_type=jnp.float32) + b2_ref[...] # (2Bt, C)

    # Sum over pool types, sigmoid, then one small 2D transpose so channels
    # land on sublanes for the lane-broadcast rescale.
    scale = jax.nn.sigmoid(att[:bt] + att[bt:])                     # (Bt, C)
    scale_t = scale.T.astype(out_ref.dtype)                         # (C, Bt)

    # Rescale each image: (C, HW) * (C, 1) broadcast over lanes.
    for b in range(bt):  # static unroll over the (small, capped) batch tile
        out_ref[b] = x[b] * scale_t[:, b:b + 1]


def _pick_batch_tile(batch, per_batch_bytes, tile_budget_bytes,
                     max_batch_tile=MAX_BATCH_TILE):
    """Largest divisor-of-batch tile whose block fits the VMEM budget (and the
    unroll cap); keeps >= 2 grid steps (megacore) when that still leaves
    >= 1 MiB blocks."""
    divisors = [d for d in range(1, batch + 1) if batch % d == 0]
    fits = [d for d in divisors
            if d <= max_batch_tile and d * per_batch_bytes <= tile_budget_bytes]
    if not fits:
        return 1
    best = max(fits)
    multi_step = [d for d in fits if batch // d >= 2]
    if multi_step:
        cand = max(multi_step)
        if cand * per_batch_bytes >= (1 << 20):
            best = cand
    return best


def cam_forward(x_nchw, w1, b1, w2, b2, *, tile_budget_bytes=6 * 1024 * 1024):
    """x_nchw: (B, C, H, W). Weights: w1 (C, Hid), b1 (1, Hid), w2 (Hid, C),
    b2 (1, C). Returns x * sigmoid(mlp(avg_pool(x)) + mlp(max_pool(x)))."""
    B, C, H, W = x_nchw.shape
    HW = H * W
    Hid = w1.shape[1]
    x = x_nchw.reshape(B, C, HW)

    per_batch_bytes = C * HW * x.dtype.itemsize
    bt = _pick_batch_tile(B, per_batch_bytes, tile_budget_bytes)
    grid = B // bt

    out = pl.pallas_call(
        cam_kernel,
        out_shape=jax.ShapeDtypeStruct((B, C, HW), x.dtype),
        grid_spec=pltpu.PrefetchScalarGridSpec(
            num_scalar_prefetch=0,
            grid=(grid,),
            in_specs=[
                pl.BlockSpec((bt, C, HW), lambda i: (i, 0, 0)),
                pl.BlockSpec((C, Hid), lambda i: (0, 0)),
                pl.BlockSpec((1, Hid), lambda i: (0, 0)),
                pl.BlockSpec((Hid, C), lambda i: (0, 0)),
                pl.BlockSpec((1, C), lambda i: (0, 0)),
            ],
            out_specs=pl.BlockSpec((bt, C, HW), lambda i: (i, 0, 0)),
        ),
        compiler_params=pltpu.CompilerParams(
            dimension_semantics=("parallel",)),
    )(x, w1, b1, w2, b2)
    return out.reshape(B, C, H, W)


def cam_reference(x_nchw, w1, b1, w2, b2):
    """Pure-JAX reference matching the PyTorch CAM forward (avg+max pools)."""
    avg = jnp.mean(x_nchw, axis=(2, 3))                   # (B, C)
    mx = jnp.max(x_nchw, axis=(2, 3))                     # (B, C)

    def mlp(v):
        h = v @ w1 + b1
        h = jnp.where(h > 0, h, 0.2 * h)
        return h @ w2 + b2

    att = mlp(avg) + mlp(mx)                              # (B, C)
    scale = jax.nn.sigmoid(att)[:, :, None, None]         # (B, C, 1, 1)
    return x_nchw * scale


if __name__ == "__main__":
    # Module config: gate_channels=64, reduction_ratio=16 -> hidden=4,
    # pool_types=['avg', 'max'], output_weight=False.
    B, C, H, W = 2, 64, 16, 16
    R = 16
    Hid = C // R

    key = jax.random.PRNGKey(0)
    kx, k1, k2, k3, k4 = jax.random.split(key, 5)

    x = jax.random.normal(kx, (B, C, H, W), dtype=jnp.float32)

    # Deterministic synthetic parameters (Linear: gate->gate//r, gate//r->gate).
    w1 = jax.random.normal(k1, (C, Hid), dtype=jnp.float32) * (1.0 / np.sqrt(C))
    b1 = jax.random.normal(k2, (1, Hid), dtype=jnp.float32) * 0.1
    w2 = jax.random.normal(k3, (Hid, C), dtype=jnp.float32) * (1.0 / np.sqrt(Hid))
    b2 = jax.random.normal(k4, (1, C), dtype=jnp.float32) * 0.1

    out = cam_forward(x, w1, b1, w2, b2)
    out = jax.block_until_ready(out)

    ref = cam_reference(x, w1, b1, w2, b2)
    np.testing.assert_allclose(np.asarray(out), np.asarray(ref),
                               rtol=1e-5, atol=1e-5)

    print("KERNEL_OK")
</pallas_src>

<mosaic_0001>
module attributes {stable_mosaic.version = 11 : i64} {
  func.func @cam_kernel(%arg0: i32, %arg1: memref<2x64x256xf32, #tpu.memory_space<vmem>>, %arg2: memref<64x4xf32, #tpu.memory_space<vmem>>, %arg3: memref<1x4xf32, #tpu.memory_space<vmem>>, %arg4: memref<4x64xf32, #tpu.memory_space<vmem>>, %arg5: memref<1x64xf32, #tpu.memory_space<vmem>>, %arg6: memref<2x64x256xf32, #tpu.memory_space<vmem>>) attributes {dimension_semantics = [#tpu.dimension_semantics<parallel>], iteration_bounds = array<i64: 1>, scalar_prefetch = 0 : i64, scratch_operands = 0 : i64, tpu.core_type = #tpu.core_type<tc>, window_params = [{transform_indices = @transform_0, window_bounds = array<i64: 2, 64, 256>}, {pipeline_mode = #tpu.pipeline_mode<synchronous>, transform_indices = @transform_1, window_bounds = array<i64: 64, 4>}, {pipeline_mode = #tpu.pipeline_mode<synchronous>, transform_indices = @transform_2, window_bounds = array<i64: 1, 4>}, {pipeline_mode = #tpu.pipeline_mode<synchronous>, transform_indices = @transform_3, window_bounds = array<i64: 4, 64>}, {pipeline_mode = #tpu.pipeline_mode<synchronous>, transform_indices = @transform_4, window_bounds = array<i64: 1, 64>}, {transform_indices = @transform_5, window_bounds = array<i64: 2, 64, 256>}]} {
    %c0 = arith.constant 0 : index
    %c0_0 = arith.constant 0 : index
    %c0_1 = arith.constant 0 : index
    %0 = vector.load %arg1[%c0, %c0_0, %c0_1] : memref<2x64x256xf32, #tpu.memory_space<vmem>>, vector<2x64x256xf32>
    %cst = arith.constant dense<0.000000e+00> : vector<2x64xf32>
    %1 = vector.multi_reduction <add>, %0, %cst [2] : vector<2x64x256xf32> to vector<2x64xf32>
    %cst_2 = arith.constant 3.906250e-03 : f32
    %2 = vector.broadcast %cst_2 : f32 to vector<2x64xf32>
    %3 = arith.mulf %1, %2 : vector<2x64xf32>
    %cst_3 = arith.constant dense<0xFF800000> : vector<2x64xf32>
    %4 = vector.multi_reduction <maximumf>, %0, %cst_3 [2] : vector<2x64x256xf32> to vector<2x64xf32>
    %5 = tpu.concatenate %3, %4 in 0 : vector<2x64xf32>, vector<2x64xf32> -> vector<4x64xf32>
    %c0_4 = arith.constant 0 : index
    %c0_5 = arith.constant 0 : index
    %6 = vector.load %arg2[%c0_4, %c0_5] : memref<64x4xf32, #tpu.memory_space<vmem>>, vector<64x4xf32>
    %cst_6 = arith.constant dense<0.000000e+00> : vector<4x4xf32>
    %7 = tpu.matmul %5, %6, %cst_6 {dimension_numbers = #tpu.dot_dimension_numbers<[1], [0], [0], [1], [0, 0, 1, 1], [], []>} : vector<4x64xf32>, vector<64x4xf32>, vector<4x4xf32> -> vector<4x4xf32>
    %c0_7 = arith.constant 0 : index
    %c0_8 = arith.constant 0 : index
    %8 = vector.load %arg3[%c0_7, %c0_8] : memref<1x4xf32, #tpu.memory_space<vmem>>, vector<1x4xf32>
    %9 = vector.broadcast %8 : vector<1x4xf32> to vector<4x4xf32>
    %10 = arith.addf %7, %9 : vector<4x4xf32>
    %cst_9 = arith.constant 0.000000e+00 : f32
    %11 = vector.broadcast %cst_9 : f32 to vector<4x4xf32>
    %12 = arith.cmpf ogt, %10, %11 : vector<4x4xf32>
    %cst_10 = arith.constant 2.000000e-01 : f32
    %13 = vector.broadcast %cst_10 : f32 to vector<4x4xf32>
    %14 = arith.mulf %13, %10 : vector<4x4xf32>
    %15 = arith.select %12, %10, %14 : vector<4x4xi1>, vector<4x4xf32>
    %c0_11 = arith.constant 0 : index
    %c0_12 = arith.constant 0 : index
    %16 = vector.load %arg4[%c0_11, %c0_12] : memref<4x64xf32, #tpu.memory_space<vmem>>, vector<4x64xf32>
    %cst_13 = arith.constant dense<0.000000e+00> : vector<4x64xf32>
    %17 = tpu.matmul %15, %16, %cst_13 {dimension_numbers = #tpu.dot_dimension_numbers<[1], [0], [0], [1], [0, 0, 1, 1], [], []>} : vector<4x4xf32>, vector<4x64xf32>, vector<4x64xf32> -> vector<4x64xf32>
    %c0_14 = arith.constant 0 : index
    %c0_15 = arith.constant 0 : index
    %18 = vector.load %arg5[%c0_14, %c0_15] : memref<1x64xf32, #tpu.memory_space<vmem>>, vector<1x64xf32>
    %19 = vector.broadcast %18 : vector<1x64xf32> to vector<4x64xf32>
    %20 = arith.addf %17, %19 : vector<4x64xf32>
    %21 = vector.extract_strided_slice %20 {offsets = [0, 0], sizes = [2, 64], strides = [1, 1]} : vector<4x64xf32> to vector<2x64xf32>
    %22 = vector.extract_strided_slice %20 {offsets = [2, 0], sizes = [2, 64], strides = [1, 1]} : vector<4x64xf32> to vector<2x64xf32>
    %23 = arith.addf %21, %22 : vector<2x64xf32>
    %24 = arith.negf %23 : vector<2x64xf32>
    %25 = math.exp %24 : vector<2x64xf32>
    %cst_16 = arith.constant 1.000000e+00 : f32
    %26 = vector.broadcast %cst_16 : f32 to vector<2x64xf32>
    %27 = arith.addf %26, %25 : vector<2x64xf32>
    %28 = arith.divf %26, %27 : vector<2x64xf32>
    %29 = tpu.transpose %28, [1, 0] : vector<2x64xf32> -> vector<64x2xf32>
    %30 = vector.extract_strided_slice %0 {offsets = [0, 0, 0], sizes = [1, 64, 256], strides = [1, 1, 1]} : vector<2x64x256xf32> to vector<1x64x256xf32>
    %31 = vector.shape_cast %30 : vector<1x64x256xf32> to vector<64x256xf32>
    %32 = vector.extract_strided_slice %29 {offsets = [0, 0], sizes = [64, 1], strides = [1, 1]} : vector<64x2xf32> to vector<64x1xf32>
    %33 = vector.broadcast %32 : vector<64x1xf32> to vector<64x256xf32>
    %34 = arith.mulf %31, %33 : vector<64x256xf32>
    %c0_17 = arith.constant 0 : index
    %c0_18 = arith.constant 0 : index
    %c0_19 = arith.constant 0 : index
    %35 = vector.load %arg6[%c0_17, %c0_18, %c0_19] : memref<2x64x256xf32, #tpu.memory_space<vmem>>, vector<1x64x256xf32>
    %36 = vector.shape_cast %35 : vector<1x64x256xf32> to vector<64x256xf32>
    %37 = vector.shape_cast %34 : vector<64x256xf32> to vector<1x64x256xf32>
    tpu.vector_store %arg6[%c0_17, %c0_18, %c0_19], %37 {strides = array<i32>} : memref<2x64x256xf32, #tpu.memory_space<vmem>>, vector<1x64x256xf32>,
    %38 = vector.extract_strided_slice %0 {offsets = [1, 0, 0], sizes = [1, 64, 256], strides = [1, 1, 1]} : vector<2x64x256xf32> to vector<1x64x256xf32>
    %39 = vector.shape_cast %38 : vector<1x64x256xf32> to vector<64x256xf32>
    %40 = vector.extract_strided_slice %29 {offsets = [0, 1], sizes = [64, 1], strides = [1, 1]} : vector<64x2xf32> to vector<64x1xf32>
    %41 = vector.broadcast %40 : vector<64x1xf32> to vector<64x256xf32>
    %42 = arith.mulf %39, %41 : vector<64x256xf32>
    %c1 = arith.constant 1 : index
    %c0_20 = arith.constant 0 : index
    %c0_21 = arith.constant 0 : index
    %43 = vector.load %arg6[%c1, %c0_20, %c0_21] : memref<2x64x256xf32, #tpu.memory_space<vmem>>, vector<1x64x256xf32>
    %44 = vector.shape_cast %43 : vector<1x64x256xf32> to vector<64x256xf32>
    %45 = vector.shape_cast %42 : vector<64x256xf32> to vector<1x64x256xf32>
    tpu.vector_store %arg6[%c1, %c0_20, %c0_21], %45 {strides = array<i32>} : memref<2x64x256xf32, #tpu.memory_space<vmem>>, vector<1x64x256xf32>,
    return
  }
  func.func @transform_0(%arg0: i32) -> (i32, i32, i32) {
    %c0_i32 = arith.constant 0 : i32
    %c0_i32_0 = arith.constant 0 : i32
    %c0_i32_1 = arith.constant 0 : i32
    return %arg0, %c0_i32, %c0_i32_0 : i32, i32, i32
  }
  func.func @transform_1(%arg0: i32) -> (i32, i32) {
    %c0_i32 = arith.constant 0 : i32
    %c0_i32_0 = arith.constant 0 : i32
    %c0_i32_1 = arith.constant 0 : i32
    return %c0_i32, %c0_i32_0 : i32, i32
  }
  func.func @transform_2(%arg0: i32) -> (i32, i32) {
    %c0_i32 = arith.constant 0 : i32
    %c0_i32_0 = arith.constant 0 : i32
    %c0_i32_1 = arith.constant 0 : i32
    return %c0_i32, %c0_i32_0 : i32, i32
  }
  func.func @transform_3(%arg0: i32) -> (i32, i32) {
    %c0_i32 = arith.constant 0 : i32
    %c0_i32_0 = arith.constant 0 : i32
    %c0_i32_1 = arith.constant 0 : i32
    return %c0_i32, %c0_i32_0 : i32, i32
  }
  func.func @transform_4(%arg0: i32) -> (i32, i32) {
    %c0_i32 = arith.constant 0 : i32
    %c0_i32_0 = arith.constant 0 : i32
    %c0_i32_1 = arith.constant 0 : i32
    return %c0_i32, %c0_i32_0 : i32, i32
  }
  func.func @transform_5(%arg0: i32) -> (i32, i32, i32) {
    %c0_i32 = arith.constant 0 : i32
    %c0_i32_0 = arith.constant 0 : i32
    %c0_i32_1 = arith.constant 0 : i32
    return %arg0, %c0_i32, %c0_i32_0 : i32, i32, i32
  }
}

</mosaic_0001>

<llo_original>
// kernel: tpu_custom_call.1
$region0: #{tpu_custom_call.1}
  #allocation0 [shape = 'u32[]', space=smem, size = 0x4, offset = 0x4, fixed_abs, tag = 'smem constant byte address 0x4 - core index']
  #allocation1 [shape = 'u32[72,128]{1,0:T(1,128)}', space=vmem, size = 0x9000, scoped, tag = 'internal scratch']
  %s0 = inlined_call_operand.hbm [shape: f32[2,64,256], index: 0, kind: input, shape index: {}]
  %s1 = inlined_call_operand.vmem [shape: f32[64,4], index: 1, kind: input, shape index: {}]
  %s2 = inlined_call_operand.vmem [shape: f32[1,4], index: 2, kind: input, shape index: {}]
  %s3 = inlined_call_operand.vmem [shape: f32[4,64], index: 3, kind: input, shape index: {}]
  %s4 = inlined_call_operand.vmem [shape: f32[1,64], index: 4, kind: input, shape index: {}]
  %s5 = inlined_call_operand.hbm [shape: f32[2,64,256], index: 5, kind: output, shape index: {}]
  %s6 = sld [smem:[#allocation0]]
  $region34: #{tpu_custom_call.1} parent=0
    _
  %s8 = ssub.s32 1, %s6
  %s9 = scalar_select 0, %s8, %s6
  $region1: #{tpu_custom_call.1} parent=0
    #allocation2 [shape = 'u8[131072]{0}', space=vmem, size = 0x20000, scoped, tag = 'input window, operand 0, single buffered']
    #allocation3 [shape = 's32[1]{0}', space=sflag, size = 0x4, scoped, tag = 'scoped memory for tpu_custom_call.1']
    #allocation4 [shape = 's32[1]{0}', space=sflag, size = 0x4, scoped, tag = 'scoped memory for tpu_custom_call.1']
    #allocation5 [shape = 'u8[131072]{0}', space=vmem, size = 0x20000, scoped, tag = 'output window, operand 0, single buffered']
    %10 = vsyncpa [#allocation3], 0
    %11 = vsyncpa [#allocation4], 0
    // Predicated region
    $region2: #{tpu_custom_call.1} parent=1 // pred_check
      _
    $region3: #{tpu_custom_call.1} parent=1 // pred_check_branch
      %13 = sbr.rel (0) target = $region5
    $region4: #{tpu_custom_call.1} parent=1 // pred_region
      %15 = vsyncadd [#allocation3], 0
      %s16 = sshll.u32 %s0, 4
      %s17 = int_to_ptr.hbm [resolvable:$true] %s16
      %s18 = sshll.u32 [#allocation2], 4
      %s19 = int_to_ptr.vmem [resolvable:$true] %s18
      %24 = dma.hbm_to_vmem [thread:$0]  %s17, 4096, %s19, [#allocation3], 256, 256, 16
    $region5: #{tpu_custom_call.1} parent=1 // pred_fallthru
      _
    // Predicated region
    $region6: #{tpu_custom_call.1} parent=1 // pred_check
      _
    $region7: #{tpu_custom_call.1} parent=1 // pred_check_branch
      %26 = sbr.rel (0) target = $region9
    $region8: #{tpu_custom_call.1} parent=1 // pred_region
      _
    $region9: #{tpu_custom_call.1} parent=1 // pred_fallthru
      _
    // Predicated region
    $region10: #{tpu_custom_call.1} parent=1 // pred_check
      _
    $region11: #{tpu_custom_call.1} parent=1 // pred_check_branch
      %28 = sbr.rel (0) target = $region13
    $region12: #{tpu_custom_call.1} parent=1 // pred_region
      _
    $region13: #{tpu_custom_call.1} parent=1 // pred_fallthru
      _
    // Predicated region
    $region14: #{tpu_custom_call.1} parent=1 // pred_check
      _
    $region15: #{tpu_custom_call.1} parent=1 // pred_check_branch
      %30 = sbr.rel (0) target = $region17
    $region16: #{tpu_custom_call.1} parent=1 // pred_region
      _
    $region17: #{tpu_custom_call.1} parent=1 // pred_fallthru
      _
    // Predicated region
    $region18: #{tpu_custom_call.1} parent=1 // pred_check
      _
    $region19: #{tpu_custom_call.1} parent=1 // pred_check_branch
      %32 = sbr.rel (0) target = $region21
    $region20: #{tpu_custom_call.1} parent=1 // pred_region
      _
    $region21: #{tpu_custom_call.1} parent=1 // pred_fallthru
      _
    // Predicated region
    $region22: #{tpu_custom_call.1} parent=1 // pred_check
      _
    $region23: #{tpu_custom_call.1} parent=1 // pred_check_branch
      %34 = sbr.rel (0) target = $region25
    $region24: #{tpu_custom_call.1} parent=1 // pred_region
      %36 = dma.done [#allocation3], 4096
    $region25: #{tpu_custom_call.1} parent=1 // pred_fallthru
      _
    %v37 = vld [vmem:[#allocation2] sm:$0xff]
    %v38 = vld [vmem:[#allocation2 + $0x8] sm:$0xff]
    %v39 = vld [vmem:[#allocation2 + $0x10] sm:$0xff]
    %v40 = vld [vmem:[#allocation2 + $0x18] sm:$0xff]
    %v41 = vld [vmem:[#allocation2 + $0x20] sm:$0xff]
    %v42 = vld [vmem:[#allocation2 + $0x28] sm:$0xff]
    %v43 = vld [vmem:[#allocation2 + $0x30] sm:$0xff]
    %v44 = vld [vmem:[#allocation2 + $0x38] sm:$0xff]
    %v45 = vld [vmem:[#allocation2 + $0x40] sm:$0xff]
    %v46 = vld [vmem:[#allocation2 + $0x48] sm:$0xff]
    %v47 = vld [vmem:[#allocation2 + $0x50] sm:$0xff]
    %v48 = vld [vmem:[#allocation2 + $0x58] sm:$0xff]
    %v49 = vld [vmem:[#allocation2 + $0x60] sm:$0xff]
    %v50 = vld [vmem:[#allocation2 + $0x68] sm:$0xff]
    %v51 = vld [vmem:[#allocation2 + $0x70] sm:$0xff]
    %v52 = vld [vmem:[#allocation2 + $0x78] sm:$0xff]
    %v53 = vld [vmem:[#allocation2 + $0x80] sm:$0xff]
    %v54 = vld [vmem:[#allocation2 + $0x88] sm:$0xff]
    %v55 = vld [vmem:[#allocation2 + $0x90] sm:$0xff]
    %v56 = vld [vmem:[#allocation2 + $0x98] sm:$0xff]
    %v57 = vld [vmem:[#allocation2 + $0xa0] sm:$0xff]
    %v58 = vld [vmem:[#allocation2 + $0xa8] sm:$0xff]
    %v59 = vld [vmem:[#allocation2 + $0xb0] sm:$0xff]
    %v60 = vld [vmem:[#allocation2 + $0xb8] sm:$0xff]
    %v61 = vld [vmem:[#allocation2 + $0xc0] sm:$0xff]
    %v62 = vld [vmem:[#allocation2 + $0xc8] sm:$0xff]
    %v63 = vld [vmem:[#allocation2 + $0xd0] sm:$0xff]
    %v64 = vld [vmem:[#allocation2 + $0xd8] sm:$0xff]
    %v65 = vld [vmem:[#allocation2 + $0xe0] sm:$0xff]
    %v66 = vld [vmem:[#allocation2 + $0xe8] sm:$0xff]
    %v67 = vld [vmem:[#allocation2 + $0xf0] sm:$0xff]
    %v68 = vld [vmem:[#allocation2 + $0xf8] sm:$0xff]
    %v69 = vadd.f32 %v37, %v38
    %70 = vadd.xlane.f32.xlu0 %v69
    %v71 = vpop.xlane.xlu0 %70
    %v72 = vadd.f32 %v39, %v40
    %73 = vadd.xlane.f32.xlu0 %v72
    %v74 = vpop.xlane.xlu0 %73
    %v75 = vadd.f32 %v41, %v42
    %76 = vadd.xlane.f32.xlu0 %v75
    %v77 = vpop.xlane.xlu0 %76
    %v78 = vadd.f32 %v43, %v44
    %79 = vadd.xlane.f32.xlu0 %v78
    %v80 = vpop.xlane.xlu0 %79
    %v81 = vadd.f32 %v45, %v46
    %82 = vadd.xlane.f32.xlu0 %v81
    %v83 = vpop.xlane.xlu0 %82
    %v84 = vadd.f32 %v47, %v48
    %85 = vadd.xlane.f32.xlu0 %v84
    %v86 = vpop.xlane.xlu0 %85
    %v87 = vadd.f32 %v49, %v50
    %88 = vadd.xlane.f32.xlu0 %v87
    %v89 = vpop.xlane.xlu0 %88
    %v90 = vadd.f32 %v51, %v52
    %91 = vadd.xlane.f32.xlu0 %v90
    %v92 = vpop.xlane.xlu0 %91
    %v93 = vadd.f32 %v53, %v54
    %94 = vadd.xlane.f32.xlu0 %v93
    %v95 = vpop.xlane.xlu0 %94
    %v96 = vadd.f32 %v55, %v56
    %97 = vadd.xlane.f32.xlu0 %v96
    %v98 = vpop.xlane.xlu0 %97
    %v99 = vadd.f32 %v57, %v58
    %100 = vadd.xlane.f32.xlu0 %v99
    %v101 = vpop.xlane.xlu0 %100
    %v102 = vadd.f32 %v59, %v60
    %103 = vadd.xlane.f32.xlu0 %v102
    %v104 = vpop.xlane.xlu0 %103
    %v105 = vadd.f32 %v61, %v62
    %106 = vadd.xlane.f32.xlu0 %v105
    %v107 = vpop.xlane.xlu0 %106
    %v108 = vadd.f32 %v63, %v64
    %109 = vadd.xlane.f32.xlu0 %v108
    %v110 = vpop.xlane.xlu0 %109
    %v111 = vadd.f32 %v65, %v66
    %112 = vadd.xlane.f32.xlu0 %v111
    %v113 = vpop.xlane.xlu0 %112
    %v114 = vadd.f32 %v67, %v68
    %115 = vadd.xlane.f32.xlu0 %v114
    %v116 = vpop.xlane.xlu0 %115
    %v117 = vmul.f32 %v71, 0.00390625
    %v118 = vmul.f32 %v74, 0.00390625
    %v119 = vmul.f32 %v77, 0.00390625
    %v120 = vmul.f32 %v80, 0.00390625
    %v121 = vmul.f32 %v83, 0.00390625
    %v122 = vmul.f32 %v86, 0.00390625
    %v123 = vmul.f32 %v89, 0.00390625
    %v124 = vmul.f32 %v92, 0.00390625
    %v125 = vmul.f32 %v95, 0.00390625
    %v126 = vmul.f32 %v98, 0.00390625
    %v127 = vmul.f32 %v101, 0.00390625
    %v128 = vmul.f32 %v104, 0.00390625
    %v129 = vmul.f32 %v107, 0.00390625
    %v130 = vmul.f32 %v110, 0.00390625
    %v131 = vmul.f32 %v113, 0.00390625
    %v132 = vmul.f32 %v116, 0.00390625
    %v133 = vmax.f32 %v37, %v38
    %134 = vmax.xlane.f32.xlu0 %v133
    %v135 = vpop.xlane.xlu0 %134
    %v136 = vmax.f32 %v39, %v40
    %137 = vmax.xlane.f32.xlu0 %v136
    %v138 = vpop.xlane.xlu0 %137
    %v139 = vmax.f32 %v41, %v42
    %140 = vmax.xlane.f32.xlu0 %v139
    %v141 = vpop.xlane.xlu0 %140
    %v142 = vmax.f32 %v43, %v44
    %143 = vmax.xlane.f32.xlu0 %v142
    %v144 = vpop.xlane.xlu0 %143
    %v145 = vmax.f32 %v45, %v46
    %146 = vmax.xlane.f32.xlu0 %v145
    %v147 = vpop.xlane.xlu0 %146
    %v148 = vmax.f32 %v47, %v48
    %149 = vmax.xlane.f32.xlu0 %v148
    %v150 = vpop.xlane.xlu0 %149
    %v151 = vmax.f32 %v49, %v50
    %152 = vmax.xlane.f32.xlu0 %v151
    %v153 = vpop.xlane.xlu0 %152
    %v154 = vmax.f32 %v51, %v52
    %155 = vmax.xlane.f32.xlu0 %v154
    %v156 = vpop.xlane.xlu0 %155
    %v157 = vmax.f32 %v53, %v54
    %158 = vmax.xlane.f32.xlu0 %v157
    %v159 = vpop.xlane.xlu0 %158
    %v160 = vmax.f32 %v55, %v56
    %161 = vmax.xlane.f32.xlu0 %v160
    %v162 = vpop.xlane.xlu0 %161
    %v163 = vmax.f32 %v57, %v58
    %164 = vmax.xlane.f32.xlu0 %v163
    %v165 = vpop.xlane.xlu0 %164
    %v166 = vmax.f32 %v59, %v60
    %167 = vmax.xlane.f32.xlu0 %v166
    %v168 = vpop.xlane.xlu0 %167
    %v169 = vmax.f32 %v61, %v62
    %170 = vmax.xlane.f32.xlu0 %v169
    %v171 = vpop.xlane.xlu0 %170
    %v172 = vmax.f32 %v63, %v64
    %173 = vmax.xlane.f32.xlu0 %v172
    %v174 = vpop.xlane.xlu0 %173
    %v175 = vmax.f32 %v65, %v66
    %176 = vmax.xlane.f32.xlu0 %v175
    %v177 = vpop.xlane.xlu0 %176
    %v178 = vmax.f32 %v67, %v68
    %179 = vmax.xlane.f32.xlu0 %v178
    %v180 = vpop.xlane.xlu0 %179
    %v197 = vlaneseq
    %v198 = vand.u32 %v197, 127
    %v199 = vperm.slane %v117, %v198
    %v200 = vadd.s32 %v198, 4294967288
    %v201 = vperm.slane %v118, %v200
    %vm202 = vcmask 130112
    %v203 = vsel %vm202, %v201, %v199
    %v204 = vadd.s32 %v198, 4294967280
    %v205 = vperm.slane %v119, %v204
    %vm206 = vcmask 195712
    %v207 = vsel %vm206, %v205, %v203
    %v208 = vadd.s32 %v198, 4294967272
    %v209 = vperm.slane %v120, %v208
    %vm210 = vcmask 261312
    %v211 = vsel %vm210, %v209, %v207
    %v212 = vadd.s32 %v198, 4294967264
    %v213 = vperm.slane %v121, %v212
    %vm214 = vcmask 326912
    %v215 = vsel %vm214, %v213, %v211
    %v216 = vadd.s32 %v198, 4294967256
    %v217 = vperm.slane %v122, %v216
    %vm218 = vcmask 392512
    %v219 = vsel %vm218, %v217, %v215
    %v220 = vadd.s32 %v198, 4294967248
    %v221 = vperm.slane %v123, %v220
    %vm222 = vcmask 458112
    %v223 = vsel %vm222, %v221, %v219
    %v224 = vadd.s32 %v198, 4294967240
    %v225 = vperm.slane %v124, %v224
    %vm226 = vcmask 523712
    %v227 = vsel %vm226, %v225, %v223
    %v228 = vperm.slane %v125, %v198
    %v229 = vperm.slane %v126, %v200
    %v230 = vsel %vm202, %v229, %v228
    %v231 = vperm.slane %v127, %v204
    %v232 = vsel %vm206, %v231, %v230
    %v233 = vperm.slane %v128, %v208
    %v234 = vsel %vm210, %v233, %v232
    %v235 = vperm.slane %v129, %v212
    %v236 = vsel %vm214, %v235, %v234
    %v237 = vperm.slane %v130, %v216
    %v238 = vsel %vm218, %v237, %v236
    %v239 = vperm.slane %v131, %v220
    %v240 = vsel %vm222, %v239, %v238
    %v241 = vperm.slane %v132, %v224
    %v242 = vsel %vm226, %v241, %v240
    %vm243 = vcmask 1041409
    %v244 = vsel %vm243, %v242, %v227
    %v262 = vperm.slane %v135, %v198
    %v263 = vperm.slane %v138, %v200
    %v264 = vsel %vm202, %v263, %v262
    %v265 = vperm.slane %v141, %v204
    %v266 = vsel %vm206, %v265, %v264
    %v267 = vperm.slane %v144, %v208
    %v268 = vsel %vm210, %v267, %v266
    %v269 = vperm.slane %v147, %v212
    %v270 = vsel %vm214, %v269, %v268
    %v271 = vperm.slane %v150, %v216
    %v272 = vsel %vm218, %v271, %v270
    %v273 = vperm.slane %v153, %v220
    %v274 = vsel %vm222, %v273, %v272
    %v275 = vperm.slane %v156, %v224
    %v276 = vsel %vm226, %v275, %v274
    %v277 = vperm.slane %v159, %v198
    %v278 = vperm.slane %v162, %v200
    %v279 = vsel %vm202, %v278, %v277
    %v280 = vperm.slane %v165, %v204
    %v281 = vsel %vm206, %v280, %v279
    %v282 = vperm.slane %v168, %v208
    %v283 = vsel %vm210, %v282, %v281
    %v284 = vperm.slane %v171, %v212
    %v285 = vsel %vm214, %v284, %v283
    %v286 = vperm.slane %v174, %v216
    %v287 = vsel %vm218, %v286, %v285
    %v288 = vperm.slane %v177, %v220
    %v289 = vsel %vm222, %v288, %v287
    %v290 = vperm.slane %v180, %v224
    %v291 = vsel %vm226, %v290, %v289
    %vm292 = vcmask 1043459
    %v293 = vsel %vm292, %v291, %v276
    %vm295 = vcmask 1041408
    %v296 = vsel %vm295, %v244, %v293
    %v297 = vld [vmem:[%s1] sm:$0xff]
    %v298 = vld [vmem:[%s1 + $0x8] sm:$0xff]
    %v299 = vld [vmem:[%s1 + $0x10] sm:$0xff]
    %v300 = vld [vmem:[%s1 + $0x18] sm:$0xff]
    %v301 = vld [vmem:[%s1 + $0x20] sm:$0xff]
    %v302 = vld [vmem:[%s1 + $0x28] sm:$0xff]
    %v303 = vld [vmem:[%s1 + $0x30] sm:$0xff]
    %v304 = vld [vmem:[%s1 + $0x38] sm:$0xff]
    %v305 = vld [vmem:[%s2] sm:$0x1]
    %v307 = vperm.slane %v305, 0
    %vm309 = vcmask 523264
    %v311 = vsel %vm309, %v296, 0
    %313 = vmatpush.msra.mxu0 0.0
    %314 = vmatpush.msra.mxu0 0.0
    %315 = vmatpush.msra.mxu0 0.0
    %316 = vmatpush.msra.mxu0 0.0
    %317 = vmatpush.msra.mxu0 0.0
    %318 = vmatpush.msra.mxu0 0.0
    %319 = vmatpush.msra.mxu0 0.0
    %320 = vmatpush.msra.mxu0 0.0
    %321 = vmatpush.msra.mxu0 %v304
    %322 = vmatpush.msra.mxu0 %v303
    %323 = vmatpush.msra.mxu0 %v302
    %324 = vmatpush.msra.mxu0 %v301
    %325 = vmatpush.msra.mxu0 %v300
    %326 = vmatpush.msra.mxu0 %v299
    %327 = vmatpush.msra.mxu0 %v298
    %328 = vmatpush.msra.mxu0 %v297
    %329 = vmatmul.f32.gmra.mxu0 %v311
    %v330 = vpop.f32.mrf.mxu0
    %v331 = vadd.f32 %v307, %v330
    %332 = vdwg.mxu0
    %vm333 = vcmp.gt.f32.partialorder %v331, 0.0
    %v334 = vmul.f32 %v331, 0.2
    %v335 = vsel %vm333, %v331, %v334
    %v336 = vld [vmem:[%s3] sm:$0xf]
    %v337 = vld [vmem:[%s4] sm:$0x1]
    %v339 = vperm.slane %v337, 0
    %vm341 = vcmask 31744
    %v343 = vsel %vm341, %v335, 0
    %vm345 = vcmask 1043456
    %v347 = vsel %vm345, %v336, 0
    %349 = vmatpush.msra.mxu0 0.0
    %350 = vmatpush.msra.mxu0 0.0
    %351 = vmatpush.msra.mxu0 0.0
    %352 = vmatpush.msra.mxu0 0.0
    %353 = vmatpush.msra.mxu0 0.0
    %354 = vmatpush.msra.mxu0 0.0
    %355 = vmatpush.msra.mxu0 0.0
    %356 = vmatpush.msra.mxu0 0.0
    %357 = vmatpush.msra.mxu0 0.0
    %358 = vmatpush.msra.mxu0 0.0
    %359 = vmatpush.msra.mxu0 0.0
    %360 = vmatpush.msra.mxu0 0.0
    %361 = vmatpush.msra.mxu0 0.0
    %362 = vmatpush.msra.mxu0 0.0
    %363 = vmatpush.msra.mxu0 0.0
    %364 = vmatpush.msra.mxu0 %v347
    %365 = vmatmul.f32.gmra.mxu0 %v343
    %v366 = vpop.f32.mrf.mxu0
    %v367 = vadd.f32 %v339, %v366
    %368 = vdwg.mxu0
    %v370 = vrot.slane %v367, 2
    %v372 = vadd.f32 %v367, %v370
    %v373 = vxor.u32 %v372, 2147483648
    %v374 = vmul.f32 %v373, 1.442695
    %v375 = vpow.pop %v374
    %v376 = vadd.f32 %v375, 1.0
    %v377 = vrcp.pop %v376
    %v378 = vmul.f32 %v376, %v377
    %v379 = vsub.f32 1.0, %v378
    %v380 = vmul.f32 %v377, %v379
    %v381 = vadd.f32 %v377, %v380
    %vm382 = vweird.f32 %v376
    %vm383 = vweird.f32 %v377
    %vm384 = vmor %vm382, %vm383
    %v385 = vsel %vm384, %v377, %v381
    %v386 = vand.u32 2147483647, %v376
    %vm387 = vcmp.eq.f32.partialorder %v386, 8.507059e+37
    %v388 = vand.u32 %v376, 2147483648
    %v389 = vor.u32 1.1754944e-38, %v388
    %v390 = vsel %vm387, %v389, %v385
    %v391 = vmul.f32 1.0, %v390
    %392 = vxpose.xlu0.b32.start [1/16] %v391, 128
    %393 = vxpose.xlu0.b32.cont [2/16] 0.0, 128
    %394 = vxpose.xlu0.b32.cont [3/16] 0.0, 128
    %395 = vxpose.xlu0.b32.cont [4/16] 0.0, 128
    %396 = vxpose.xlu0.b32.cont [5/16] 0.0, 128
    %397 = vxpose.xlu0.b32.cont [6/16] 0.0, 128
    %398 = vxpose.xlu0.b32.cont [7/16] 0.0, 128
    %399 = vxpose.xlu0.b32.cont [8/16] 0.0, 128
    %400 = vxpose.xlu0.b32.cont [9/16] 0.0, 128
    %401 = vxpose.xlu0.b32.cont [10/16] 0.0, 128
    %402 = vxpose.xlu0.b32.cont [11/16] 0.0, 128
    %403 = vxpose.xlu0.b32.cont [12/16] 0.0, 128
    %404 = vxpose.xlu0.b32.cont [13/16] 0.0, 128
    %405 = vxpose.xlu0.b32.cont [14/16] 0.0, 128
    %406 = vxpose.xlu0.b32.cont [15/16] 0.0, 128
    %407 = vxpose.xlu0.b32.end [16/16] 0.0, 128
    %v408 = vpop.trf.xlu0
    %v409 = vpop.trf.xlu0
    %v410 = vpop.trf.xlu0
    %v411 = vpop.trf.xlu0
    %v412 = vpop.trf.xlu0
    %v413 = vpop.trf.xlu0
    %v414 = vpop.trf.xlu0
    %v415 = vpop.trf.xlu0
    %v416 = vpop.trf.xlu0
    %v417 = vpop.trf.xlu0
    %v418 = vpop.trf.xlu0
    %v419 = vpop.trf.xlu0
    %v420 = vpop.trf.xlu0
    %v421 = vpop.trf.xlu0
    %v422 = vpop.trf.xlu0
    %v423 = vpop.trf.xlu0
    %425 = vset.pattern.permute.xlu0 0
    %426 = vperm.xlu0 %425, %v408
    %v427 = vpop.permute.xlu0 %426
    %430 = vset.pattern.permute.xlu0 0
    %431 = vperm.xlu0 %430, %v409
    %v432 = vpop.permute.xlu0 %431
    %435 = vset.pattern.permute.xlu0 0
    %436 = vperm.xlu0 %435, %v410
    %v437 = vpop.permute.xlu0 %436
    %440 = vset.pattern.permute.xlu0 0
    %441 = vperm.xlu0 %440, %v411
    %v442 = vpop.permute.xlu0 %441
    %445 = vset.pattern.permute.xlu0 0
    %446 = vperm.xlu0 %445, %v412
    %v447 = vpop.permute.xlu0 %446
    %450 = vset.pattern.permute.xlu0 0
    %451 = vperm.xlu0 %450, %v413
    %v452 = vpop.permute.xlu0 %451
    %455 = vset.pattern.permute.xlu0 0
    %456 = vperm.xlu0 %455, %v414
    %v457 = vpop.permute.xlu0 %456
    %460 = vset.pattern.permute.xlu0 0
    %461 = vperm.xlu0 %460, %v415
    %v462 = vpop.permute.xlu0 %461
    %v464 = vmul.f32 %v37, %v427
    %v465 = vmul.f32 %v38, %v427
    %v466 = vmul.f32 %v39, %v432
    %v467 = vmul.f32 %v40, %v432
    %v468 = vmul.f32 %v41, %v437
    %v469 = vmul.f32 %v42, %v437
    %v470 = vmul.f32 %v43, %v442
    %v471 = vmul.f32 %v44, %v442
    %v472 = vmul.f32 %v45, %v447
    %v473 = vmul.f32 %v46, %v447
    %v474 = vmul.f32 %v47, %v452
    %v475 = vmul.f32 %v48, %v452
    %v476 = vmul.f32 %v49, %v457
    %v477 = vmul.f32 %v50, %v457
    %v478 = vmul.f32 %v51, %v462
    %v479 = vmul.f32 %v52, %v462
    %480 = vst [vmem:[#allocation5] sm:$0xff] %v464
    %481 = vst [vmem:[#allocation5 + $0x8] sm:$0xff] %v465
    %482 = vst [vmem:[#allocation5 + $0x10] sm:$0xff] %v466
    %483 = vst [vmem:[#allocation5 + $0x18] sm:$0xff] %v467
    %484 = vst [vmem:[#allocation5 + $0x20] sm:$0xff] %v468
    %485 = vst [vmem:[#allocation5 + $0x28] sm:$0xff] %v469
    %486 = vst [vmem:[#allocation5 + $0x30] sm:$0xff] %v470
    %487 = vst [vmem:[#allocation5 + $0x38] sm:$0xff] %v471
    %488 = vst [vmem:[#allocation5 + $0x40] sm:$0xff] %v472
    %489 = vst [vmem:[#allocation5 + $0x48] sm:$0xff] %v473
    %490 = vst [vmem:[#allocation5 + $0x50] sm:$0xff] %v474
    %491 = vst [vmem:[#allocation5 + $0x58] sm:$0xff] %v475
    %492 = vst [vmem:[#allocation5 + $0x60] sm:$0xff] %v476
    %493 = vst [vmem:[#allocation5 + $0x68] sm:$0xff] %v477
    %494 = vst [vmem:[#allocation5 + $0x70] sm:$0xff] %v478
    %495 = vst [vmem:[#allocation5 + $0x78] sm:$0xff] %v479
    %496 = vset.pattern.permute.xlu0 1
    %497 = vperm.xlu0 %496, %v408
    %v498 = vpop.permute.xlu0 %497
    %500 = vset.pattern.permute.xlu0 1
    %501 = vperm.xlu0 %500, %v409
    %v502 = vpop.permute.xlu0 %501
    %504 = vset.pattern.permute.xlu0 1
    %505 = vperm.xlu0 %504, %v410
    %v506 = vpop.permute.xlu0 %505
    %508 = vset.pattern.permute.xlu0 1
    %509 = vperm.xlu0 %508, %v411
    %v510 = vpop.permute.xlu0 %509
    %512 = vset.pattern.permute.xlu0 1
    %513 = vperm.xlu0 %512, %v412
    %v514 = vpop.permute.xlu0 %513
    %516 = vset.pattern.permute.xlu0 1
    %517 = vperm.xlu0 %516, %v413
    %v518 = vpop.permute.xlu0 %517
    %520 = vset.pattern.permute.xlu0 1
    %521 = vperm.xlu0 %520, %v414
    %v522 = vpop.permute.xlu0 %521
    %524 = vset.pattern.permute.xlu0 1
    %525 = vperm.xlu0 %524, %v415
    %v526 = vpop.permute.xlu0 %525
    %v528 = vmul.f32 %v53, %v498
    %v529 = vmul.f32 %v54, %v498
    %v530 = vmul.f32 %v55, %v502
    %v531 = vmul.f32 %v56, %v502
    %v532 = vmul.f32 %v57, %v506
    %v533 = vmul.f32 %v58, %v506
    %v534 = vmul.f32 %v59, %v510
    %v535 = vmul.f32 %v60, %v510
    %v536 = vmul.f32 %v61, %v514
    %v537 = vmul.f32 %v62, %v514
    %v538 = vmul.f32 %v63, %v518
    %v539 = vmul.f32 %v64, %v518
    %v540 = vmul.f32 %v65, %v522
    %v541 = vmul.f32 %v66, %v522
    %v542 = vmul.f32 %v67, %v526
    %v543 = vmul.f32 %v68, %v526
    %s544 = scalar_lea.vmem [#allocation5], 128
    %545 = vst [vmem:[%s544] sm:$0xff] %v528
    %546 = vst [vmem:[%s544 + $0x8] sm:$0xff] %v529
    %547 = vst [vmem:[%s544 + $0x10] sm:$0xff] %v530
    %548 = vst [vmem:[%s544 + $0x18] sm:$0xff] %v531
    %549 = vst [vmem:[%s544 + $0x20] sm:$0xff] %v532
    %550 = vst [vmem:[%s544 + $0x28] sm:$0xff] %v533
    %551 = vst [vmem:[%s544 + $0x30] sm:$0xff] %v534
    %552 = vst [vmem:[%s544 + $0x38] sm:$0xff] %v535
    %553 = vst [vmem:[%s544 + $0x40] sm:$0xff] %v536
    %554 = vst [vmem:[%s544 + $0x48] sm:$0xff] %v537
    %555 = vst [vmem:[%s544 + $0x50] sm:$0xff] %v538
    %556 = vst [vmem:[%s544 + $0x58] sm:$0xff] %v539
    %557 = vst [vmem:[%s544 + $0x60] sm:$0xff] %v540
    %558 = vst [vmem:[%s544 + $0x68] sm:$0xff] %v541
    %559 = vst [vmem:[%s544 + $0x70] sm:$0xff] %v542
    %560 = vst [vmem:[%s544 + $0x78] sm:$0xff] %v543
    // Predicated region
    $region26: #{tpu_custom_call.1} parent=1 // pred_check
      _
    $region27: #{tpu_custom_call.1} parent=1 // pred_check_branch
      %562 = sbr.rel (0) target = $region29
    $region28: #{tpu_custom_call.1} parent=1 // pred_region
      %564 = vsyncadd [#allocation4], 0
      %s565 = sshll.u32 [#allocation5], 4
      %s566 = int_to_ptr.vmem [resolvable:$true] %s565
      %s567 = sshll.u32 %s5, 4
      %s568 = int_to_ptr.hbm [resolvable:$true] %s567
      %573 = dma.vmem_to_hbm [thread:$0]  %s566, 4096, %s568, [#allocation4], 256, 256, 16
    $region29: #{tpu_custom_call.1} parent=1 // pred_fallthru
      _
    // Predicated region
    $region30: #{tpu_custom_call.1} parent=1 // pred_check
      _
    $region31: #{tpu_custom_call.1} parent=1 // pred_check_branch
      %575 = sbr.rel (0) target = $region33
    $region32: #{tpu_custom_call.1} parent=1 // pred_region
      %577 = dma.done [#allocation4], 4096
    $region33: #{tpu_custom_call.1} parent=1 // pred_fallthru
      _
    %578 = vsyncpa [#allocation3], 1
    %579 = vsyncpa [#allocation4], 1

</llo_original>
